<compile_context>
chip_gen: v6e
topology: v6e:2x2x1
jax: 0.10.0
libtpu: 0.0.40
codegen_flags: <defaults>
</compile_context>

<pallas_src>
import jax
import jax.numpy as jnp
from jax.experimental import pallas as pl
from jax.experimental.pallas import tpu as pltpu

HIDDEN = 64  # fixed by the PyTorch module


def _round_up(v, m):
    return (v + m - 1) // m * m


# ----------------------------- kernels ------------------------------------ #

def _fused_kernel(x_ref, w_ref, b_ref, o_ref):
    # out = x @ W_fused + b_fused   (single MXU pass)
    out = jnp.dot(x_ref[...], w_ref[...], preferred_element_type=jnp.float32)
    o_ref[...] = (out + b_ref[...]).astype(o_ref.dtype)


def _two_matmul_kernel(x_ref, w1_ref, b1_ref, w2_ref, b2_ref, o_ref):
    # hidden = x @ W1 + b1 ; out = hidden @ W2 + b2
    h = jnp.dot(x_ref[...], w1_ref[...], preferred_element_type=jnp.float32)
    h = h + b1_ref[...]
    out = jnp.dot(h.astype(w2_ref.dtype), w2_ref[...],
                  preferred_element_type=jnp.float32)
    o_ref[...] = (out + b2_ref[...]).astype(o_ref.dtype)


# ----------------------------- wrapper ------------------------------------ #

def fc_decoder(x, w1_t, b1, w2_t, b2, *, tm_max=256, tn_max=512):
    """x: (B, latent), w1_t: (latent, 64), b1: (1, 64),
       w2_t: (64, out), b2: (1, out)  ->  (B, out)"""
    B, latent = x.shape
    hidden, out_size = w2_t.shape
    assert hidden == HIDDEN and w1_t.shape == (latent, HIDDEN)

    # --- tile sizing: sublane-aligned batch tiles, lane-dense (x128) output tiles ---
    tm = min(tm_max, _round_up(B, 8))
    b_pad = _round_up(B, tm)
    out_pad = _round_up(out_size, 128)
    tn = min(tn_max, out_pad)
    out_pad = _round_up(out_pad, tn)

    x_p = jnp.pad(x, ((0, b_pad - B), (0, 0))) if b_pad != B else x
    if out_pad != out_size:
        w2_p = jnp.pad(w2_t, ((0, 0), (0, out_pad - out_size)))
        b2_p = jnp.pad(b2, ((0, 0), (0, out_pad - out_size)))
    else:
        w2_p, b2_p = w2_t, b2

    grid = (pl.cdiv(b_pad, tm), pl.cdiv(out_pad, tn))
    compiler_params = pltpu.CompilerParams(
        dimension_semantics=("parallel", "parallel"))
    out_shape = jax.ShapeDtypeStruct((b_pad, out_pad), x.dtype)

    # Fold W1/W2 only when the fused (latent, out) weight is cheaper to stream and
    # multiply than the two factor matrices (true for small latent/out, false for big).
    fuse = latent * out_pad <= latent * hidden + hidden * out_pad

    if fuse:
        # One-time algebraic fusion (done in XLA outside the kernel, f32 accumulate).
        w_f = jnp.dot(w1_t, w2_p, preferred_element_type=jnp.float32).astype(w1_t.dtype)
        b_f = (jnp.dot(b1, w2_p, preferred_element_type=jnp.float32) + b2_p).astype(b2.dtype)
        out_p = pl.pallas_call(
            _fused_kernel,
            out_shape=out_shape,
            grid_spec=pltpu.PrefetchScalarGridSpec(
                num_scalar_prefetch=0,
                grid=grid,
                in_specs=[
                    pl.BlockSpec((tm, latent), lambda i, j: (i, 0)),
                    pl.BlockSpec((latent, tn), lambda i, j: (0, j)),
                    pl.BlockSpec((1, tn), lambda i, j: (0, j)),
                ],
                out_specs=pl.BlockSpec((tm, tn), lambda i, j: (i, j)),
            ),
            compiler_params=compiler_params,
        )(x_p, w_f, b_f)
    else:
        out_p = pl.pallas_call(
            _two_matmul_kernel,
            out_shape=out_shape,
            grid_spec=pltpu.PrefetchScalarGridSpec(
                num_scalar_prefetch=0,
                grid=grid,
                in_specs=[
                    pl.BlockSpec((tm, latent), lambda i, j: (i, 0)),
                    pl.BlockSpec((latent, hidden), lambda i, j: (0, 0)),   # VMEM-resident
                    pl.BlockSpec((1, hidden), lambda i, j: (0, 0)),        # VMEM-resident
                    pl.BlockSpec((hidden, tn), lambda i, j: (0, j)),
                    pl.BlockSpec((1, tn), lambda i, j: (0, j)),
                ],
                out_specs=pl.BlockSpec((tm, tn), lambda i, j: (i, j)),
            ),
            compiler_params=compiler_params,
        )(x_p, w1_t, b1, w2_p, b2_p)

    return out_p[:B, :out_size]


# ------------------------------ params ------------------------------------ #

def init_params(key, latent_size, output_size):
    """Deterministic PyTorch-style init: U(-1/sqrt(fan_in), 1/sqrt(fan_in))."""
    k1, k2, k3, k4 = jax.random.split(key, 4)
    bound1 = 1.0 / jnp.sqrt(latent_size)
    bound2 = 1.0 / jnp.sqrt(HIDDEN)
    # PyTorch Linear weight is (out, in); store transposed (in, out) for the kernel.
    w1_t = jax.random.uniform(k1, (latent_size, HIDDEN), jnp.float32, -bound1, bound1)
    b1 = jax.random.uniform(k2, (1, HIDDEN), jnp.float32, -bound1, bound1)
    w2_t = jax.random.uniform(k3, (HIDDEN, output_size), jnp.float32, -bound2, bound2)
    b2 = jax.random.uniform(k4, (1, output_size), jnp.float32, -bound2, bound2)
    return w1_t, b1, w2_t, b2


# ------------------------------- demo -------------------------------------- #

if __name__ == "__main__":
    key = jax.random.PRNGKey(0)

    # Case 1: small latent / non-128-multiple output -> fused single-matmul path,
    #         exercises the lane-padding (200 -> 256) and slice-back.
    latent_size, output_size, batch = 32, 200, 8
    kx, kp, key = jax.random.split(key, 3)
    x = jax.random.normal(kx, (batch, latent_size), jnp.float32)
    w1_t, b1, w2_t, b2 = init_params(kp, latent_size, output_size)
    out = jax.block_until_ready(fc_decoder(x, w1_t, b1, w2_t, b2))
    ref = (x @ w1_t + b1) @ w2_t + b2
    assert out.shape == (batch, output_size)
    assert jnp.allclose(out, ref, atol=1e-4, rtol=1e-4)

    # Case 2: larger latent -> two-matmul path (fusion would cost more FLOPs/bytes).
    latent_size, output_size, batch = 256, 384, 16
    kx, kp, key = jax.random.split(key, 3)
    x = jax.random.normal(kx, (batch, latent_size), jnp.float32)
    w1_t, b1, w2_t, b2 = init_params(kp, latent_size, output_size)
    out = jax.block_until_ready(fc_decoder(x, w1_t, b1, w2_t, b2))
    ref = (x @ w1_t + b1) @ w2_t + b2
    assert out.shape == (batch, output_size)
    assert jnp.allclose(out, ref, atol=1e-4, rtol=1e-4)

    print("KERNEL_OK")
</pallas_src>

<mosaic_0001>
module attributes {stable_mosaic.version = 11 : i64} {
  func.func @_fused_kernel(%arg0: i32, %arg1: i32, %arg2: memref<8x32xf32, #tpu.memory_space<vmem>>, %arg3: memref<32x256xf32, #tpu.memory_space<vmem>>, %arg4: memref<1x256xf32, #tpu.memory_space<vmem>>, %arg5: memref<8x256xf32, #tpu.memory_space<vmem>>) attributes {dimension_semantics = [#tpu.dimension_semantics<parallel>, #tpu.dimension_semantics<parallel>], iteration_bounds = array<i64: 1, 1>, scalar_prefetch = 0 : i64, scratch_operands = 0 : i64, tpu.core_type = #tpu.core_type<tc>, window_params = [{transform_indices = @transform_0, window_bounds = array<i64: 8, 32>}, {transform_indices = @transform_1, window_bounds = array<i64: 32, 256>}, {transform_indices = @transform_2, window_bounds = array<i64: 1, 256>}, {transform_indices = @transform_3, window_bounds = array<i64: 8, 256>}]} {
    %c0 = arith.constant 0 : index
    %c0_0 = arith.constant 0 : index
    %0 = vector.load %arg2[%c0, %c0_0] : memref<8x32xf32, #tpu.memory_space<vmem>>, vector<8x32xf32>
    %c0_1 = arith.constant 0 : index
    %c0_2 = arith.constant 0 : index
    %1 = vector.load %arg3[%c0_1, %c0_2] : memref<32x256xf32, #tpu.memory_space<vmem>>, vector<32x256xf32>
    %cst = arith.constant dense<0.000000e+00> : vector<8x256xf32>
    %2 = tpu.matmul %0, %1, %cst {dimension_numbers = #tpu.dot_dimension_numbers<[1], [0], [0], [1], [0, 0, 1, 1], [], []>} : vector<8x32xf32>, vector<32x256xf32>, vector<8x256xf32> -> vector<8x256xf32>
    %c0_3 = arith.constant 0 : index
    %c0_4 = arith.constant 0 : index
    %3 = vector.load %arg4[%c0_3, %c0_4] : memref<1x256xf32, #tpu.memory_space<vmem>>, vector<1x256xf32>
    %4 = vector.broadcast %3 : vector<1x256xf32> to vector<8x256xf32>
    %5 = arith.addf %2, %4 : vector<8x256xf32>
    %c0_5 = arith.constant 0 : index
    %c0_6 = arith.constant 0 : index
    %6 = vector.load %arg5[%c0_5, %c0_6] : memref<8x256xf32, #tpu.memory_space<vmem>>, vector<8x256xf32>
    tpu.vector_store %arg5[%c0_5, %c0_6], %5 {strides = array<i32>} : memref<8x256xf32, #tpu.memory_space<vmem>>, vector<8x256xf32>,
    return
  }
  func.func @transform_0(%arg0: i32, %arg1: i32) -> (i32, i32) {
    %c0_i32 = arith.constant 0 : i32
    %c0_i32_0 = arith.constant 0 : i32
    return %arg0, %c0_i32 : i32, i32
  }
  func.func @transform_1(%arg0: i32, %arg1: i32) -> (i32, i32) {
    %c0_i32 = arith.constant 0 : i32
    %c0_i32_0 = arith.constant 0 : i32
    return %c0_i32, %arg1 : i32, i32
  }
  func.func @transform_2(%arg0: i32, %arg1: i32) -> (i32, i32) {
    %c0_i32 = arith.constant 0 : i32
    %c0_i32_0 = arith.constant 0 : i32
    return %c0_i32, %arg1 : i32, i32
  }
  func.func @transform_3(%arg0: i32, %arg1: i32) -> (i32, i32) {
    %c0_i32 = arith.constant 0 : i32
    return %arg0, %arg1 : i32, i32
  }
}

</mosaic_0001>

<llo_original>
// kernel: tpu_custom_call.1
$region0: #{tpu_custom_call.1}
  #allocation0 [shape = 'u32[]', space=smem, size = 0x4, offset = 0x4, fixed_abs, tag = 'smem constant byte address 0x4 - core index']
  #allocation1 [shape = 'u32[144,128]{1,0:T(1,128)}', space=vmem, size = 0x12000, scoped, tag = 'internal scratch']
  %s0 = inlined_call_operand.hbm [shape: f32[8,32], index: 0, kind: input, shape index: {}]
  %s1 = inlined_call_operand.hbm [shape: f32[32,256], index: 1, kind: input, shape index: {}]
  %s2 = inlined_call_operand.vmem [shape: f32[1,256], index: 2, kind: input, shape index: {}]
  %s3 = inlined_call_operand.hbm [shape: f32[8,256], index: 3, kind: output, shape index: {}]
  %s4 = sld [smem:[#allocation0]]
  $region30: #{tpu_custom_call.1} parent=0
    _
  %s6 = ssub.s32 1, %s4
  %s7 = scalar_select 0, %s6, %s4
  $region1: #{tpu_custom_call.1} parent=0
    #allocation2 [shape = 'u8[4096]{0}', space=vmem, size = 0x1000, scoped, tag = 'input window, operand 0, single buffered']
    #allocation3 [shape = 's32[1]{0}', space=sflag, size = 0x4, scoped, tag = 'scoped memory for tpu_custom_call.1']
    #allocation4 [shape = 's32[1]{0}', space=sflag, size = 0x4, scoped, tag = 'scoped memory for tpu_custom_call.1']
    #allocation5 [shape = 'u8[32768]{0}', space=vmem, size = 0x8000, scoped, tag = 'input window, operand 1, single buffered']
    #allocation6 [shape = 's32[1]{0}', space=sflag, size = 0x4, scoped, tag = 'scoped memory for tpu_custom_call.1']
    #allocation7 [shape = 'u8[8192]{0}', space=vmem, size = 0x2000, scoped, tag = 'output window, operand 0, single buffered']
    %8 = vsyncpa [#allocation3], 0
    %9 = vsyncpa [#allocation6], 0
    %10 = vsyncpa [#allocation4], 0
    // Predicated region
    $region2: #{tpu_custom_call.1} parent=1 // pred_check
      _
    $region3: #{tpu_custom_call.1} parent=1 // pred_check_branch
      %12 = sbr.rel (0) target = $region5
    $region4: #{tpu_custom_call.1} parent=1 // pred_region
      %s14 = ssub.s32 128, 128
      %15 = vsyncadd [#allocation3], %s14
      %s17 = sshll.u32 [#allocation2], 4
      %s18 = int_to_ptr.vmem [resolvable:$true] %s17
      %20 = dma.hbm_to_vmem [thread:$0]  %s0, 128, %s18, [#allocation3]
    $region5: #{tpu_custom_call.1} parent=1 // pred_fallthru
      _
    // Predicated region
    $region6: #{tpu_custom_call.1} parent=1 // pred_check
      _
    $region7: #{tpu_custom_call.1} parent=1 // pred_check_branch
      %22 = sbr.rel (0) target = $region9
    $region8: #{tpu_custom_call.1} parent=1 // pred_region
      %s24 = ssub.s32 1024, 1024
      %25 = vsyncadd [#allocation6], %s24
      %s26 = sshll.u32 [#allocation5], 4
      %s27 = int_to_ptr.vmem [resolvable:$true] %s26
      %32 = dma.hbm_to_vmem [thread:$0]  %s1, 1024, %s27, [#allocation6], 256, 256, 16
    $region9: #{tpu_custom_call.1} parent=1 // pred_fallthru
      _
    // Predicated region
    $region10: #{tpu_custom_call.1} parent=1 // pred_check
      _
    $region11: #{tpu_custom_call.1} parent=1 // pred_check_branch
      %34 = sbr.rel (0) target = $region13
    $region12: #{tpu_custom_call.1} parent=1 // pred_region
      _
    $region13: #{tpu_custom_call.1} parent=1 // pred_fallthru
      _
    // Predicated region
    $region14: #{tpu_custom_call.1} parent=1 // pred_check
      _
    $region15: #{tpu_custom_call.1} parent=1 // pred_check_branch
      %36 = sbr.rel (0) target = $region17
    $region16: #{tpu_custom_call.1} parent=1 // pred_region
      %37 = dma.done [#allocation3], 128
    $region17: #{tpu_custom_call.1} parent=1 // pred_fallthru
      _
    // Predicated region
    $region18: #{tpu_custom_call.1} parent=1 // pred_check
      _
    $region19: #{tpu_custom_call.1} parent=1 // pred_check_branch
      %39 = sbr.rel (0) target = $region21
    $region20: #{tpu_custom_call.1} parent=1 // pred_region
      %40 = dma.done [#allocation6], 1024
    $region21: #{tpu_custom_call.1} parent=1 // pred_fallthru
      _
    %v41 = vld [vmem:[#allocation2] sm:$0xff]
    %v42 = vld [vmem:[#allocation5] sm:$0xff]
    %v43 = vld [vmem:[#allocation5 + $0x8] sm:$0xff]
    %v44 = vld [vmem:[#allocation5 + $0x10] sm:$0xff]
    %v45 = vld [vmem:[#allocation5 + $0x18] sm:$0xff]
    %v46 = vld [vmem:[#allocation5 + $0x20] sm:$0xff]
    %v47 = vld [vmem:[#allocation5 + $0x28] sm:$0xff]
    %v48 = vld [vmem:[#allocation5 + $0x30] sm:$0xff]
    %v49 = vld [vmem:[#allocation5 + $0x38] sm:$0xff]
    %v50 = vld [vmem:[%s2] sm:$0x3]
    %v52 = vlaneseq
    %v53 = vshrl.u32 %v52, 7
    %v54 = vsub.s32 0, %v53
    %v55 = vrot.slane %v50, %v54
    %v56 = vlaneseq
    %v57 = vshrl.u32 %v56, 7
    %v58 = vsub.s32 1, %v57
    %v59 = vrot.slane %v50, %v58
    %vm62 = vcmask 261120
    %v64 = vsel %vm62, %v41, 0
    %66 = vmatprep.subr.mxu0 0.0
    %67 = vmatpush1.msra.mxu0 0.0
    %68 = vmatprep.subr.mxu0 0.0
    %69 = vmatpush1.msra.mxu0 0.0
    %70 = vmatprep.subr.mxu0 0.0
    %71 = vmatpush1.msra.mxu0 0.0
    %72 = vmatprep.subr.mxu0 0.0
    %73 = vmatpush1.msra.mxu0 0.0
    %74 = vmatprep.subr.mxu0 0.0
    %75 = vmatpush1.msra.mxu0 0.0
    %76 = vmatprep.subr.mxu0 0.0
    %77 = vmatpush1.msra.mxu0 0.0
    %78 = vmatprep.subr.mxu0 0.0
    %79 = vmatpush1.msra.mxu0 0.0
    %80 = vmatprep.subr.mxu0 0.0
    %81 = vmatpush1.msra.mxu0 0.0
    %82 = vmatprep.subr.mxu0 0.0
    %83 = vmatpush1.msra.mxu0 0.0
    %84 = vmatprep.subr.mxu0 0.0
    %85 = vmatpush1.msra.mxu0 0.0
    %86 = vmatprep.subr.mxu0 0.0
    %87 = vmatpush1.msra.mxu0 0.0
    %88 = vmatprep.subr.mxu0 0.0
    %89 = vmatpush1.msra.mxu0 0.0
    %90 = vmatprep.subr.mxu0 %v49
    %91 = vmatpush1.msra.mxu0 %v48
    %92 = vmatprep.subr.mxu0 %v47
    %93 = vmatpush1.msra.mxu0 %v46
    %94 = vmatprep.subr.mxu0 %v45
    %95 = vmatpush1.msra.mxu0 %v44
    %96 = vmatprep.subr.mxu0 %v43
    %97 = vmatpush1.msra.mxu0 %v42
    %98 = vmatprep.subr.mxu0 0.0
    %99 = vmatpush2.msra.mxu0 0.0
    %100 = vmatprep.subr.mxu0 0.0
    %101 = vmatpush2.msra.mxu0 0.0
    %102 = vmatprep.subr.mxu0 0.0
    %103 = vmatpush2.msra.mxu0 0.0
    %104 = vmatprep.subr.mxu0 0.0
    %105 = vmatpush2.msra.mxu0 0.0
    %106 = vmatprep.subr.mxu0 0.0
    %107 = vmatpush2.msra.mxu0 0.0
    %108 = vmatprep.subr.mxu0 0.0
    %109 = vmatpush2.msra.mxu0 0.0
    %110 = vmatprep.subr.mxu0 0.0
    %111 = vmatpush2.msra.mxu0 0.0
    %112 = vmatprep.subr.mxu0 0.0
    %113 = vmatpush2.msra.mxu0 0.0
    %114 = vmatprep.subr.mxu0 0.0
    %115 = vmatpush2.msra.mxu0 0.0
    %116 = vmatprep.subr.mxu0 0.0
    %117 = vmatpush2.msra.mxu0 0.0
    %118 = vmatprep.subr.mxu0 0.0
    %119 = vmatpush2.msra.mxu0 0.0
    %120 = vmatprep.subr.mxu0 0.0
    %121 = vmatpush2.msra.mxu0 0.0
    %122 = vmatprep.subr.mxu0 0.0
    %123 = vmatpush2.msra.mxu0 0.0
    %124 = vmatprep.subr.mxu0 0.0
    %125 = vmatpush2.msra.mxu0 0.0
    %126 = vmatprep.subr.mxu0 0.0
    %127 = vmatpush2.msra.mxu0 0.0
    %128 = vmatprep.subr.mxu0 0.0
    %129 = vmatpush2.msra.mxu0 0.0
    %130 = vmatprep.mubr.f32.mxu0 0.0
    %131 = vmatmul.mubr.f32.gmra.mxu0 %v64
    %v132 = vpop.f32.mrf.mxu0
    %v133 = vadd.f32 %v55, %v132
    %v134 = vpop.f32.mrf.mxu0
    %v135 = vadd.f32 %v59, %v134
    %136 = vdwg.mxu0
    %137 = vst [vmem:[#allocation7] sm:$0xff] %v133
    %138 = vst [vmem:[#allocation7 + $0x8] sm:$0xff] %v135
    // Predicated region
    $region22: #{tpu_custom_call.1} parent=1 // pred_check
      _
    $region23: #{tpu_custom_call.1} parent=1 // pred_check_branch
      %140 = sbr.rel (0) target = $region25
    $region24: #{tpu_custom_call.1} parent=1 // pred_region
      %s142 = ssub.s32 256, 256
      %143 = vsyncadd [#allocation4], %s142
      %s145 = sshll.u32 [#allocation7], 4
      %s146 = int_to_ptr.vmem [resolvable:$true] %s145
      %148 = dma.vmem_to_hbm [thread:$0]  %s146, 256, %s3, [#allocation4]
    $region25: #{tpu_custom_call.1} parent=1 // pred_fallthru
      _
    // Predicated region
    $region26: #{tpu_custom_call.1} parent=1 // pred_check
      _
    $region27: #{tpu_custom_call.1} parent=1 // pred_check_branch
      %150 = sbr.rel (0) target = $region29
    $region28: #{tpu_custom_call.1} parent=1 // pred_region
      %151 = dma.done [#allocation4], 256
    $region29: #{tpu_custom_call.1} parent=1 // pred_fallthru
      _
    %152 = vsyncpa [#allocation3], 1
    %153 = vsyncpa [#allocation6], 1
    %154 = vsyncpa [#allocation4], 1

</llo_original>
